<compile_context>
chip_gen: v6e
topology: v6e:2x2x1
jax: 0.10.0
libtpu: 0.0.40
codegen_flags: <defaults>
</compile_context>

<pallas_src>
import functools

import jax
import jax.numpy as jnp
from jax.experimental import pallas as pl
from jax.experimental.pallas import tpu as pltpu


def _round_up(x, m):
    return (x + m - 1) // m * m


def _conv_bn_silu_kernel(patches_ref, w_ref, b_ref, out_ref):
    # patches_ref: (1, TM, KKCp)  bf16   im2col rows for this tile
    # w_ref:       (KKCp, Coutp)  bf16   BN-folded conv weight (resident)
    # b_ref:       (1, Coutp)     f32    BN-folded bias
    # out_ref:     (1, TM, Coutp) f32
    acc = jnp.dot(patches_ref[0], w_ref[...],
                  preferred_element_type=jnp.float32)        # MXU, f32 accumulate
    y = acc + b_ref[...]                                     # bias add in f32
    # SiLU(y) = y * sigmoid(y); exp and approx reciprocal both use the EUP slot.
    sig = pl.reciprocal(1.0 + jnp.exp(-y), approx=True)
    out_ref[0] = y * sig


def conv_bn_silu_forward(x_nchw, params, kernel_size, stride=1, dilation=1,
                         groups=1, eps=1e-5, tile_m=512):
    """Pallas implementation of Conv.forward (Conv2d -> BN(eval) -> SiLU).

    Input/output are NCHW.
    """
    assert stride == 1 and dilation == 1 and groups == 1, \
        "only s=1, d=1, g=1 supported"
    B, Cin, H, W = x_nchw.shape
    Cout = params["conv_w"].shape[0]
    K = kernel_size
    p = K // 2                       # autopad for odd K ("same" output)
    HW = H * W
    KKC = K * K * Cin

    # MXU / lane friendly padded sizes.
    KKCp = _round_up(KKC, 128)
    Coutp = _round_up(Cout, 128)
    TM = min(tile_m, _round_up(HW, 8))      # multiple of 8
    HWp = _round_up(HW, TM)

    # ---- fold BatchNorm (inference, running stats) into the conv weight ----
    scale = params["bn_gamma"] / jnp.sqrt(params["bn_var"] + eps)     # (Cout,)
    w_fold = params["conv_w"] * scale[:, None, None, None]            # OIHW
    b_fold = params["bn_beta"] - params["bn_mean"] * scale            # (Cout,)

    # OIHW -> HWIO -> (KKC, Cout); zero-pad to (KKCp, Coutp); bf16 for the MXU.
    w_m = jnp.transpose(w_fold, (2, 3, 1, 0)).reshape(KKC, Cout)
    w_m = jnp.pad(w_m, ((0, KKCp - KKC), (0, Coutp - Cout))).astype(jnp.bfloat16)
    b_m = jnp.pad(b_fold, (0, Coutp - Cout)).astype(jnp.float32)[None, :]

    # ---- plain-JAX glue: layout change, padding, im2col ((di,dj) major,
    #      channel fastest -- matches the HWIO weight flattening above) ----
    x_nhwc = jnp.transpose(x_nchw, (0, 2, 3, 1)).astype(jnp.float32)
    xpad = jnp.pad(x_nhwc, ((0, 0), (p, p), (p, p), (0, 0)))
    patches = jnp.stack(
        [xpad[:, di:di + H, dj:dj + W, :] for di in range(K) for dj in range(K)],
        axis=3).reshape(B, HW, KKC)
    patches = jnp.pad(patches, ((0, 0), (0, HWp - HW), (0, KKCp - KKC)))
    patches = patches.astype(jnp.bfloat16)

    grid = (B, HWp // TM)
    out = pl.pallas_call(
        _conv_bn_silu_kernel,
        out_shape=jax.ShapeDtypeStruct((B, HWp, Coutp), jnp.float32),
        grid_spec=pltpu.PrefetchScalarGridSpec(
            num_scalar_prefetch=0,
            grid=grid,
            in_specs=[
                pl.BlockSpec((1, TM, KKCp), lambda b, t: (b, t, 0)),
                pl.BlockSpec((KKCp, Coutp), lambda b, t: (0, 0)),   # resident
                pl.BlockSpec((1, Coutp), lambda b, t: (0, 0)),      # resident
            ],
            out_specs=pl.BlockSpec((1, TM, Coutp), lambda b, t: (b, t, 0)),
        ),
        compiler_params=pltpu.CompilerParams(
            dimension_semantics=("parallel", "parallel"),
            vmem_limit_bytes=64 * 1024 * 1024),
    )(patches, w_m, b_m)

    out = out[:, :HW, :Cout].reshape(B, H, W, Cout)
    return jnp.transpose(out, (0, 3, 1, 2))     # back to NCHW


# ---------------------------------------------------------------------------
# Deterministic parameter init (shapes per the PyTorch module __init__).
# ---------------------------------------------------------------------------
def init_params(key, c1, c2, k):
    ks = jax.random.split(key, 5)
    bound = 1.0 / float(c1 * k * k) ** 0.5
    return dict(
        conv_w=jax.random.uniform(ks[0], (c2, c1, k, k), jnp.float32,
                                  -bound, bound),
        bn_gamma=jax.random.uniform(ks[1], (c2,), jnp.float32, 0.5, 1.5),
        bn_beta=jax.random.uniform(ks[2], (c2,), jnp.float32, -0.5, 0.5),
        bn_mean=jax.random.uniform(ks[3], (c2,), jnp.float32, -0.5, 0.5),
        bn_var=jax.random.uniform(ks[4], (c2,), jnp.float32, 0.5, 1.5),
    )


# ---------------------------------------------------------------------------
# Pure-JAX reference (mirrors the PyTorch forward in eval mode).
# ---------------------------------------------------------------------------
def conv_bn_silu_reference(x, params, k, eps=1e-5):
    p = k // 2
    o = jax.lax.conv_general_dilated(
        x, params["conv_w"], window_strides=(1, 1),
        padding=[(p, p), (p, p)],
        dimension_numbers=("NCHW", "OIHW", "NCHW"))
    scale = params["bn_gamma"] / jnp.sqrt(params["bn_var"] + eps)
    shift = params["bn_beta"] - params["bn_mean"] * scale
    o = o * scale[None, :, None, None] + shift[None, :, None, None]
    return o * jax.nn.sigmoid(o)        # SiLU


if __name__ == "__main__":
    B, C1, C2, H, W, K = 2, 4, 8, 16, 16, 3

    key = jax.random.PRNGKey(0)
    kx, kp = jax.random.split(key)
    x = jax.random.normal(kx, (B, C1, H, W), jnp.float32)
    params = init_params(kp, C1, C2, K)

    fwd = jax.jit(functools.partial(conv_bn_silu_forward, kernel_size=K))
    out = jax.block_until_ready(fwd(x, params))

    ref = conv_bn_silu_reference(x, params, K)
    assert out.shape == (B, C2, H, W)
    assert jnp.allclose(out, ref, atol=2e-2, rtol=2e-2), "mismatch vs reference"

    print("KERNEL_OK")
</pallas_src>

<mosaic_0001>
module attributes {stable_mosaic.version = 11 : i64} {
  func.func @_conv_bn_silu_kernel(%arg0: i32, %arg1: i32, %arg2: memref<1x256x128xbf16, #tpu.memory_space<vmem>>, %arg3: memref<128x128xbf16, #tpu.memory_space<vmem>>, %arg4: memref<1x128xf32, #tpu.memory_space<vmem>>, %arg5: memref<1x256x128xf32, #tpu.memory_space<vmem>>) attributes {dimension_semantics = [#tpu.dimension_semantics<parallel>, #tpu.dimension_semantics<parallel>], iteration_bounds = array<i64: 2, 1>, scalar_prefetch = 0 : i64, scratch_operands = 0 : i64, tpu.core_type = #tpu.core_type<tc>, window_params = [{transform_indices = @transform_0, window_bounds = array<i64: 1, 256, 128>}, {pipeline_mode = #tpu.pipeline_mode<synchronous>, transform_indices = @transform_1, window_bounds = array<i64: 128, 128>}, {pipeline_mode = #tpu.pipeline_mode<synchronous>, transform_indices = @transform_2, window_bounds = array<i64: 1, 128>}, {transform_indices = @transform_3, window_bounds = array<i64: 1, 256, 128>}]} {
    %c0 = arith.constant 0 : index
    %c0_0 = arith.constant 0 : index
    %c0_1 = arith.constant 0 : index
    %0 = vector.load %arg2[%c0, %c0_0, %c0_1] : memref<1x256x128xbf16, #tpu.memory_space<vmem>>, vector<1x256x128xbf16>
    %1 = vector.shape_cast %0 : vector<1x256x128xbf16> to vector<256x128xbf16>
    %c0_2 = arith.constant 0 : index
    %c0_3 = arith.constant 0 : index
    %2 = vector.load %arg3[%c0_2, %c0_3] : memref<128x128xbf16, #tpu.memory_space<vmem>>, vector<128x128xbf16>
    %cst = arith.constant dense<0.000000e+00> : vector<256x128xf32>
    %3 = tpu.matmul %1, %2, %cst {dimension_numbers = #tpu.dot_dimension_numbers<[1], [0], [0], [1], [0, 0, 1, 1], [], []>} : vector<256x128xbf16>, vector<128x128xbf16>, vector<256x128xf32> -> vector<256x128xf32>
    %c0_4 = arith.constant 0 : index
    %c0_5 = arith.constant 0 : index
    %4 = vector.load %arg4[%c0_4, %c0_5] : memref<1x128xf32, #tpu.memory_space<vmem>>, vector<1x128xf32>
    %5 = vector.broadcast %4 : vector<1x128xf32> to vector<256x128xf32>
    %6 = arith.addf %3, %5 : vector<256x128xf32>
    %cst_6 = arith.constant 0.000000e+00 : f32
    %7 = vector.broadcast %cst_6 : f32 to vector<256x128xf32>
    %8 = arith.subf %7, %6 : vector<256x128xf32>
    %9 = math.exp %8 : vector<256x128xf32>
    %cst_7 = arith.constant 1.000000e+00 : f32
    %10 = vector.broadcast %cst_7 : f32 to vector<256x128xf32>
    %11 = arith.addf %10, %9 : vector<256x128xf32>
    %12 = tpu.reciprocal %11 {approx = true} : vector<256x128xf32> -> vector<256x128xf32>
    %13 = arith.mulf %6, %12 : vector<256x128xf32>
    %c0_8 = arith.constant 0 : index
    %c0_9 = arith.constant 0 : index
    %c0_10 = arith.constant 0 : index
    %14 = vector.load %arg5[%c0_8, %c0_9, %c0_10] : memref<1x256x128xf32, #tpu.memory_space<vmem>>, vector<1x256x128xf32>
    %15 = vector.shape_cast %14 : vector<1x256x128xf32> to vector<256x128xf32>
    %16 = vector.shape_cast %13 : vector<256x128xf32> to vector<1x256x128xf32>
    tpu.vector_store %arg5[%c0_8, %c0_9, %c0_10], %16 {strides = array<i32>} : memref<1x256x128xf32, #tpu.memory_space<vmem>>, vector<1x256x128xf32>,
    return
  }
  func.func @transform_0(%arg0: i32, %arg1: i32) -> (i32, i32, i32) {
    %c0_i32 = arith.constant 0 : i32
    %c0_i32_0 = arith.constant 0 : i32
    return %arg0, %arg1, %c0_i32 : i32, i32, i32
  }
  func.func @transform_1(%arg0: i32, %arg1: i32) -> (i32, i32) {
    %c0_i32 = arith.constant 0 : i32
    %c0_i32_0 = arith.constant 0 : i32
    %c0_i32_1 = arith.constant 0 : i32
    return %c0_i32, %c0_i32_0 : i32, i32
  }
  func.func @transform_2(%arg0: i32, %arg1: i32) -> (i32, i32) {
    %c0_i32 = arith.constant 0 : i32
    %c0_i32_0 = arith.constant 0 : i32
    %c0_i32_1 = arith.constant 0 : i32
    return %c0_i32, %c0_i32_0 : i32, i32
  }
  func.func @transform_3(%arg0: i32, %arg1: i32) -> (i32, i32, i32) {
    %c0_i32 = arith.constant 0 : i32
    %c0_i32_0 = arith.constant 0 : i32
    return %arg0, %arg1, %c0_i32 : i32, i32, i32
  }
}

</mosaic_0001>

<llo_original>
// kernel: conv_bn_silu_forward.1
$region0: #{conv_bn_silu_forward.1}
  #allocation0 [shape = 'u32[]', space=smem, size = 0x4, offset = 0x4, fixed_abs, tag = 'smem constant byte address 0x4 - core index']
  #allocation1 [shape = 'u32[144,128]{1,0:T(1,128)}', space=vmem, size = 0x12000, scoped, tag = 'internal scratch']
  %s0 = inlined_call_operand.vmem [shape: bf16[2,256,128], index: 0, kind: input, shape index: {}]
  %s1 = inlined_call_operand.vmem [shape: bf16[128,128], index: 1, kind: input, shape index: {}]
  %s2 = inlined_call_operand.vmem [shape: f32[1,128], index: 2, kind: input, shape index: {}]
  %s3 = inlined_call_operand.vmem [shape: f32[2,256,128], index: 3, kind: output, shape index: {}]
  %s4 = sld [smem:[#allocation0]]
  $region45: #{conv_bn_silu_forward.1} parent=0
    _
  %s6 = ssub.s32 1, %s4
  %s7 = scalar_select 0, %s6, %s4
  loop: start=0, step=1, limit=4
  $region2: #{conv_bn_silu_forward.1} parent=0 // loop_pre_header
    _
  $region3: #{conv_bn_silu_forward.1} parent=0 // loop_header
    %s9 = sphi 0, %s13
    %p10 = scmp.ge.s32.totalorder %s9, 4
    %s16 = sphi 0, %s28
    %s17 = sphi 0, %s24
    %s18 = sphi 0, %s16
    %s19 = sphi 0, %s17
    %s20 = sphi 0, %s18
    %s21 = sphi 0, %s19
    %s33 = sphi 0, %s35
    %s36 = sphi 0, %s33
    %s37 = sphi 0, %s36
    %s53 = sphi 0, %s37
    %s57 = sphi 0, %s57
    %s59 = sphi 0, %s57
    %s60 = sphi 0, %s59
    %s74 = sphi 0, %s60
    %s78 = sphi 0, %s78
    %s80 = sphi 0, %s78
    %s81 = sphi 0, %s80
    %s95 = sphi 0, %s81
    %s103 = sphi 0, %s105
    %s106 = sphi 0, %s103
    %s107 = sphi 0, %s106
    %s123 = sphi 0, %s107
  $region4: #{conv_bn_silu_forward.1} parent=0 // loop_header_branch
    %12 = sbr.rel (%p10) target = $region8
  $region5: #{conv_bn_silu_forward.1} parent=0 // loop_body
    %s14 = ssub.s32 %s9, 1
    %s15 = ssub.s32 %s9, 2
    %s22 = sadd.s32 1, %s17
    %p23 = scmp.ge.s32.totalorder %s22, 1
    %s24 = scalar_select %p23, 0, %s22
    %s25 = sadd.s32 1, %s16
    %s26 = scalar_select %p23, %s25, %s16
    %p27 = scmp.ge.s32.totalorder %s26, 2
    %s28 = scalar_select %p27, 0, %s26
    %s29 = ssub.s32 %s16, %s28
    %s30 = ssub.s32 %s17, %s24
    %s31 = sor.u32 %s29, %s30
    %p32 = scmp.eq.s32.totalorder %s31, 0
    %s34 = sadd.s32 %s33, 1
    %s35 = scalar_select %p32, %s33, %s34
    %p38 = pneg %p32
    %p39 = scmp.eq.s32.totalorder %s9, 1
    %p40 = por %p38, %p39
    %p41 = scmp.ne.s32.totalorder %s33, %s36
    %p42 = scmp.eq.s32.totalorder %s9, 0
    %p43 = por %p41, %p42
    %p44 = scmp.ne.s32.totalorder %s33, %s36
    %p45 = scmp.eq.s32.totalorder %s14, 1
    %p46 = por %p44, %p45
    %p47 = scmp.ne.s32.totalorder %s36, %s37
    %p48 = scmp.eq.s32.totalorder %s14, 0
    %p49 = por %p47, %p48
    %p50 = scmp.ne.s32.totalorder %s36, %s37
    %p51 = scmp.eq.s32.totalorder %s15, 1
    %p52 = por %p50, %p51
    %p54 = scmp.ne.s32.totalorder %s37, %s53
    %p55 = scmp.eq.s32.totalorder %s15, 0
    %p56 = por %p54, %p55
    %s58 = sadd.s32 %s57, 1
    %p61 = scmp.eq.s32.totalorder %s9, 1
    %p62 = scmp.ne.s32.totalorder %s57, %s59
    %p63 = scmp.eq.s32.totalorder %s9, 0
    %p64 = por %p62, %p63
    %p65 = scmp.ne.s32.totalorder %s57, %s59
    %p66 = scmp.eq.s32.totalorder %s14, 1
    %p67 = por %p65, %p66
    %p68 = scmp.ne.s32.totalorder %s59, %s60
    %p69 = scmp.eq.s32.totalorder %s14, 0
    %p70 = por %p68, %p69
    %p71 = scmp.ne.s32.totalorder %s59, %s60
    %p72 = scmp.eq.s32.totalorder %s15, 1
    %p73 = por %p71, %p72
    %p75 = scmp.ne.s32.totalorder %s60, %s74
    %p76 = scmp.eq.s32.totalorder %s15, 0
    %p77 = por %p75, %p76
    %s79 = sadd.s32 %s78, 1
    %p82 = scmp.eq.s32.totalorder %s9, 1
    %p83 = scmp.ne.s32.totalorder %s78, %s80
    %p84 = scmp.eq.s32.totalorder %s9, 0
    %p85 = por %p83, %p84
    %p86 = scmp.ne.s32.totalorder %s78, %s80
    %p87 = scmp.eq.s32.totalorder %s14, 1
    %p88 = por %p86, %p87
    %p89 = scmp.ne.s32.totalorder %s80, %s81
    %p90 = scmp.eq.s32.totalorder %s14, 0
    %p91 = por %p89, %p90
    %p92 = scmp.ne.s32.totalorder %s80, %s81
    %p93 = scmp.eq.s32.totalorder %s15, 1
    %p94 = por %p92, %p93
    %p96 = scmp.ne.s32.totalorder %s81, %s95
    %p97 = scmp.eq.s32.totalorder %s15, 0
    %p98 = por %p96, %p97
    %s99 = ssub.s32 %s16, %s28
    %s100 = ssub.s32 %s17, %s24
    %s101 = sor.u32 %s99, %s100
    %p102 = scmp.eq.s32.totalorder %s101, 0
    %s104 = sadd.s32 %s103, 1
    %s105 = scalar_select %p102, %s103, %s104
    %p108 = pneg %p102
    %p109 = scmp.eq.s32.totalorder %s9, 1
    %p110 = por %p108, %p109
    %p111 = scmp.ne.s32.totalorder %s103, %s106
    %p112 = scmp.eq.s32.totalorder %s9, 0
    %p113 = por %p111, %p112
    %p114 = scmp.ne.s32.totalorder %s103, %s106
    %p115 = scmp.eq.s32.totalorder %s14, 1
    %p116 = por %p114, %p115
    %p117 = scmp.ne.s32.totalorder %s106, %s107
    %p118 = scmp.eq.s32.totalorder %s14, 0
    %p119 = por %p117, %p118
    %p120 = scmp.ne.s32.totalorder %s106, %s107
    %p121 = scmp.eq.s32.totalorder %s15, 1
    %p122 = por %p120, %p121
    %p124 = scmp.ne.s32.totalorder %s107, %s123
    %p125 = scmp.eq.s32.totalorder %s15, 0
    %p126 = por %p124, %p125
    %p127 = scmp.le.s32.totalorder 1, %s9
    %p128 = scmp.lt.s32.totalorder %s9, 3
    %p129 = pnand %p127, %p128
    %p130 = pneg %p129
    // Predicated region
    $region9: #{conv_bn_silu_forward.1} parent=5 // pred_check
      _
    $region10: #{conv_bn_silu_forward.1} parent=5 // pred_check_branch
      %132 = sbr.rel (%p129) target = $region12
    $region11: #{conv_bn_silu_forward.1} parent=5 // pred_region
      %s133 = ssub.s32 %s9, 1
      // Predicated region
      $region13: #{conv_bn_silu_forward.1} parent=11 // pred_check
        %p134 = pneg %p70
      $region14: #{conv_bn_silu_forward.1} parent=11 // pred_check_branch
        %136 = sbr.rel (%p134) target = $region16
      $region15: #{conv_bn_silu_forward.1} parent=11 // pred_region
        _
      $region16: #{conv_bn_silu_forward.1} parent=11 // pred_fallthru
        _
      // Predicated region
      $region17: #{conv_bn_silu_forward.1} parent=11 // pred_check
        %p137 = pneg %p91
      $region18: #{conv_bn_silu_forward.1} parent=11 // pred_check_branch
        %139 = sbr.rel (%p137) target = $region20
      $region19: #{conv_bn_silu_forward.1} parent=11 // pred_region
        _
      $region20: #{conv_bn_silu_forward.1} parent=11 // pred_fallthru
        _
    $region12: #{conv_bn_silu_forward.1} parent=5 // pred_fallthru
      _
    %p140 = scmp.lt.s32.totalorder %s9, 2
    // Predicated region
    $region21: #{conv_bn_silu_forward.1} parent=5 // pred_check
      %p141 = pneg %p140
    $region22: #{conv_bn_silu_forward.1} parent=5 // pred_check_branch
      %143 = sbr.rel (%p141) target = $region24
    $region23: #{conv_bn_silu_forward.1} parent=5 // pred_region
      // Predicated region
      $region25: #{conv_bn_silu_forward.1} parent=23 // pred_check
        %p144 = pneg %p43
      $region26: #{conv_bn_silu_forward.1} parent=23 // pred_check_branch
        %146 = sbr.rel (%p144) target = $region28
      $region27: #{conv_bn_silu_forward.1} parent=23 // pred_region
        %s147 = smul.u32 32, %s17
        %p148 = scmp.lt.s32.totalorder %s16, 1
        %s149 = scalar_select %p148, %s16, 1
        %p150 = scmp.lt.s32.totalorder %s147, 31
        %s151 = scalar_select %p150, %s147, 31
        %s152 = smul.addr %s149, 32
        %s153 = sadd.s32 %s151, %s152
        %s154 = smul.addr %s153, 4
        %s155 = scalar_lea.vmem %s0, %s154
        %s156 = smul.u32 32, %s17
      $region28: #{conv_bn_silu_forward.1} parent=23 // pred_fallthru
        _
    $region24: #{conv_bn_silu_forward.1} parent=5 // pred_fallthru
      _
    %p157 = scmp.le.s32.totalorder 1, %s9
    %p158 = scmp.lt.s32.totalorder %s9, 3
    %p159 = pnand %p157, %p158
    %p160 = pneg %p159
    // Predicated region
    $region29: #{conv_bn_silu_forward.1} parent=5 // pred_check
      _
    $region30: #{conv_bn_silu_forward.1} parent=5 // pred_check_branch
      %162 = sbr.rel (%p159) target = $region32
    $region31: #{conv_bn_silu_forward.1} parent=5 // pred_region
      %s163 = ssub.s32 %s9, 1
      %s164 = smul.u32 32, %s19
      %p165 = scmp.lt.s32.totalorder %s18, 1
      %s166 = scalar_select %p165, %s18, 1
      %p167 = scmp.lt.s32.totalorder %s164, 31
      %s168 = scalar_select %p167, %s164, 31
      %s169 = smul.addr %s166, 32
      %s170 = sadd.s32 %s168, %s169
      %s171 = smul.addr %s170, 4
      %s172 = scalar_lea.vmem %s0, %s171
      %p173 = pneg %p49
      %p174 = pneg %p46
      %p175 = pneg %p70
      %p176 = pneg %p67
      %p177 = pneg %p91
      %p178 = pneg %p88
      %p179 = pneg %p119
      %p180 = pneg %p116
      %s181 = smul.u32 32, %s19
      %p182 = scmp.lt.s32.totalorder %s18, 1
      %s183 = scalar_select %p182, %s18, 1
      %p184 = scmp.lt.s32.totalorder %s181, 31
      %s185 = scalar_select %p184, %s181, 31
      %s186 = smul.addr %s183, 32
      %s187 = sadd.s32 %s185, %s186
      %s188 = smul.addr %s187, 8
      %s189 = scalar_lea.vmem %s3, %s188
      %s190 = smul.u32 32, %s19
      %p191 = scmp.lt.s32.totalorder %s18, 1
      %s192 = scalar_select %p191, %s18, 1
      %p193 = scmp.lt.s32.totalorder %s190, 31
      %s194 = scalar_select %p193, %s190, 31
      %s195 = smul.addr %s192, 32
      %s196 = sadd.s32 %s194, %s195
      %s197 = smul.addr %s196, 4
      %s198 = scalar_lea.vmem %s0, %s197
      %s199 = smul.u32 32, %s19
      %s200 = smul.u32 32, %s19
      %p201 = scmp.lt.s32.totalorder %s18, 1
      %s202 = scalar_select %p201, %s18, 1
      %p203 = scmp.lt.s32.totalorder %s200, 31
      %s204 = scalar_select %p203, %s200, 31
      %s205 = smul.addr %s202, 32
      %s206 = sadd.s32 %s204, %s205
      %s207 = smul.addr %s206, 8
      %s208 = scalar_lea.vmem %s3, %s207
      %s209 = smul.u32 32, %s19
      %v211 = vld [vmem:[%s198] sm:$0xf]
      %v212 = vld [vmem:[%s198 + $0x4] sm:$0xf]
      %v213 = vld [vmem:[%s198 + $0x8] sm:$0xf]
      %v214 = vld [vmem:[%s198 + $0xc] sm:$0xf]
      %v215 = vld [vmem:[%s198 + $0x10] sm:$0xf]
      %v216 = vld [vmem:[%s198 + $0x14] sm:$0xf]
      %v217 = vld [vmem:[%s198 + $0x18] sm:$0xf]
      %v218 = vld [vmem:[%s198 + $0x1c] sm:$0xf]
      %v219 = vld [vmem:[%s198 + $0x20] sm:$0xf]
      %v220 = vld [vmem:[%s198 + $0x24] sm:$0xf]
      %v221 = vld [vmem:[%s198 + $0x28] sm:$0xf]
      %v222 = vld [vmem:[%s198 + $0x2c] sm:$0xf]
      %v223 = vld [vmem:[%s198 + $0x30] sm:$0xf]
      %v224 = vld [vmem:[%s198 + $0x34] sm:$0xf]
      %v225 = vld [vmem:[%s198 + $0x38] sm:$0xf]
      %v226 = vld [vmem:[%s198 + $0x3c] sm:$0xf]
      %v227 = vld [vmem:[%s198 + $0x40] sm:$0xf]
      %v228 = vld [vmem:[%s198 + $0x44] sm:$0xf]
      %v229 = vld [vmem:[%s198 + $0x48] sm:$0xf]
      %v230 = vld [vmem:[%s198 + $0x4c] sm:$0xf]
      %v231 = vld [vmem:[%s198 + $0x50] sm:$0xf]
      %v232 = vld [vmem:[%s198 + $0x54] sm:$0xf]
      %v233 = vld [vmem:[%s198 + $0x58] sm:$0xf]
      %v234 = vld [vmem:[%s198 + $0x5c] sm:$0xf]
      %v235 = vld [vmem:[%s198 + $0x60] sm:$0xf]
      %v236 = vld [vmem:[%s198 + $0x64] sm:$0xf]
      %v237 = vld [vmem:[%s198 + $0x68] sm:$0xf]
      %v238 = vld [vmem:[%s198 + $0x6c] sm:$0xf]
      %v239 = vld [vmem:[%s198 + $0x70] sm:$0xf]
      %v240 = vld [vmem:[%s198 + $0x74] sm:$0xf]
      %v241 = vld [vmem:[%s198 + $0x78] sm:$0xf]
      %v242 = vld [vmem:[%s198 + $0x7c] sm:$0xf]
      %v243 = vld [vmem:[%s1] sm:$0xf]
      %v244 = vld [vmem:[%s1 + $0x4] sm:$0xf]
      %v245 = vld [vmem:[%s1 + $0x8] sm:$0xf]
      %v246 = vld [vmem:[%s1 + $0xc] sm:$0xf]
      %v247 = vld [vmem:[%s1 + $0x10] sm:$0xf]
      %v248 = vld [vmem:[%s1 + $0x14] sm:$0xf]
      %v249 = vld [vmem:[%s1 + $0x18] sm:$0xf]
      %v250 = vld [vmem:[%s1 + $0x1c] sm:$0xf]
      %v251 = vld [vmem:[%s1 + $0x20] sm:$0xf]
      %v252 = vld [vmem:[%s1 + $0x24] sm:$0xf]
      %v253 = vld [vmem:[%s1 + $0x28] sm:$0xf]
      %v254 = vld [vmem:[%s1 + $0x2c] sm:$0xf]
      %v255 = vld [vmem:[%s1 + $0x30] sm:$0xf]
      %v256 = vld [vmem:[%s1 + $0x34] sm:$0xf]
      %v257 = vld [vmem:[%s1 + $0x38] sm:$0xf]
      %v258 = vld [vmem:[%s1 + $0x3c] sm:$0xf]
      %v259 = vld [vmem:[%s2] sm:$0x1]
      %v261 = vlaneseq
      %v262 = vshrl.u32 %v261, 7
      %v263 = vsub.s32 0, %v262
      %v264 = vrot.slane %v259, %v263
      %v298 = vunpack.c.l.b16 %v211
      %v299 = vunpack.c.l.b16 %v212
      %v300 = vunpack.c.l.b16 %v213
      %v301 = vunpack.c.l.b16 %v214
      %v302 = vunpack.c.l.b16 %v215
      %v303 = vunpack.c.l.b16 %v216
      %v304 = vunpack.c.l.b16 %v217
      %v305 = vunpack.c.l.b16 %v218
      %v306 = vunpack.c.l.b16 %v219
      %v307 = vunpack.c.l.b16 %v220
      %v308 = vunpack.c.l.b16 %v221
      %v309 = vunpack.c.l.b16 %v222
      %v310 = vunpack.c.l.b16 %v223
      %v311 = vunpack.c.l.b16 %v224
      %v312 = vunpack.c.l.b16 %v225
      %v313 = vunpack.c.l.b16 %v226
      %v314 = vunpack.c.l.b16 %v227
      %v315 = vunpack.c.l.b16 %v228
      %v316 = vunpack.c.l.b16 %v229
      %v317 = vunpack.c.l.b16 %v230
      %v318 = vunpack.c.l.b16 %v231
      %v319 = vunpack.c.l.b16 %v232
      %v320 = vunpack.c.l.b16 %v233
      %v321 = vunpack.c.l.b16 %v234
      %v322 = vunpack.c.l.b16 %v235
      %v323 = vunpack.c.l.b16 %v236
      %v324 = vunpack.c.l.b16 %v237
      %v325 = vunpack.c.l.b16 %v238
      %v326 = vunpack.c.l.b16 %v239
      %v327 = vunpack.c.l.b16 %v240
      %v328 = vunpack.c.l.b16 %v241
      %v329 = vunpack.c.l.b16 %v242
      %v330 = vpack.c.b16 %v299, %v298
      %v331 = vpack.c.b16 %v301, %v300
      %v332 = vpack.c.b16 %v303, %v302
      %v333 = vpack.c.b16 %v305, %v304
      %v334 = vpack.c.b16 %v307, %v306
      %v335 = vpack.c.b16 %v309, %v308
      %v336 = vpack.c.b16 %v311, %v310
      %v337 = vpack.c.b16 %v313, %v312
      %v338 = vpack.c.b16 %v315, %v314
      %v339 = vpack.c.b16 %v317, %v316
      %v340 = vpack.c.b16 %v319, %v318
      %v341 = vpack.c.b16 %v321, %v320
      %v342 = vpack.c.b16 %v323, %v322
      %v343 = vpack.c.b16 %v325, %v324
      %v344 = vpack.c.b16 %v327, %v326
      %v345 = vpack.c.b16 %v329, %v328
      %v378 = vunpack.c.l.b16 %v243
      %v379 = vunpack.c.l.b16 %v244
      %v380 = vunpack.c.l.b16 %v245
      %v381 = vunpack.c.l.b16 %v246
      %v382 = vunpack.c.l.b16 %v247
      %v383 = vunpack.c.l.b16 %v248
      %v384 = vunpack.c.l.b16 %v249
      %v385 = vunpack.c.l.b16 %v250
      %v386 = vunpack.c.l.b16 %v251
      %v387 = vunpack.c.l.b16 %v252
      %v388 = vunpack.c.l.b16 %v253
      %v389 = vunpack.c.l.b16 %v254
      %v390 = vunpack.c.l.b16 %v255
      %v391 = vunpack.c.l.b16 %v256
      %v392 = vunpack.c.l.b16 %v257
      %v393 = vunpack.c.l.b16 %v258
      %v394 = vpack.c.b16 %v379, %v378
      %v395 = vpack.c.b16 %v381, %v380
      %v396 = vpack.c.b16 %v383, %v382
      %v397 = vpack.c.b16 %v385, %v384
      %v398 = vpack.c.b16 %v387, %v386
      %v399 = vpack.c.b16 %v389, %v388
      %v400 = vpack.c.b16 %v391, %v390
      %v401 = vpack.c.b16 %v393, %v392
      %410 = vmatprep.subr.bf16.mxu0 0
      %411 = vmatpush1.bf16.msra.mxu0 %v401
      %412 = vmatprep.subr.bf16.mxu0 0
      %413 = vmatpush1.bf16.msra.mxu0 %v400
      %414 = vmatprep.subr.bf16.mxu0 0
      %415 = vmatpush1.bf16.msra.mxu0 %v399
      %416 = vmatprep.subr.bf16.mxu0 0
      %417 = vmatpush1.bf16.msra.mxu0 %v398
      %418 = vmatprep.subr.bf16.mxu0 0
      %419 = vmatpush1.bf16.msra.mxu0 %v397
      %420 = vmatprep.subr.bf16.mxu0 0
      %421 = vmatpush1.bf16.msra.mxu0 %v396
      %422 = vmatprep.subr.bf16.mxu0 0
      %423 = vmatpush1.bf16.msra.mxu0 %v395
      %424 = vmatprep.subr.bf16.mxu0 0
      %425 = vmatpush1.bf16.msra.mxu0 %v394
      %426 = vmatprep.subr.bf16.mxu0 0
      %427 = vmatpush2.bf16.msra.mxu0 0
      %428 = vmatprep.subr.bf16.mxu0 0
      %429 = vmatpush2.bf16.msra.mxu0 0
      %430 = vmatprep.subr.bf16.mxu0 0
      %431 = vmatpush2.bf16.msra.mxu0 0
      %432 = vmatprep.subr.bf16.mxu0 0
      %433 = vmatpush2.bf16.msra.mxu0 0
      %434 = vmatprep.subr.bf16.mxu0 0
      %435 = vmatpush2.bf16.msra.mxu0 0
      %436 = vmatprep.subr.bf16.mxu0 0
      %437 = vmatpush2.bf16.msra.mxu0 0
      %438 = vmatprep.subr.bf16.mxu0 0
      %439 = vmatpush2.bf16.msra.mxu0 0
      %440 = vmatprep.subr.bf16.mxu0 0
      %441 = vmatpush2.bf16.msra.mxu0 0
      %442 = vmatprep.mubr.bf16.mxu0 0
      %443 = vmatmul.mubr.bf16.gmra.mxu0 %v330
      %v444 = vpop.f32.mrf.mxu0
      %v445 = vadd.f32 %v264, %v444
      %v446 = vpop.f32.mrf.mxu0
      %v447 = vpop.f32.mrf.mxu0
      %v448 = vadd.f32 %v264, %v447
      %v449 = vpop.f32.mrf.mxu0
      %450 = vmatprep.mubr.bf16.mxu0 0
      %451 = vmatmul.mubr.bf16.gmra.mxu0 %v331
      %v452 = vpop.f32.mrf.mxu0
      %v453 = vadd.f32 %v264, %v452
      %v454 = vpop.f32.mrf.mxu0
      %v455 = vpop.f32.mrf.mxu0
      %v456 = vadd.f32 %v264, %v455
      %v457 = vpop.f32.mrf.mxu0
      %458 = vmatprep.mubr.bf16.mxu0 0
      %459 = vmatmul.mubr.bf16.gmra.mxu0 %v332
      %v460 = vpop.f32.mrf.mxu0
      %v461 = vadd.f32 %v264, %v460
      %v462 = vpop.f32.mrf.mxu0
      %v463 = vpop.f32.mrf.mxu0
      %v464 = vadd.f32 %v264, %v463
      %v465 = vpop.f32.mrf.mxu0
      %466 = vmatprep.mubr.bf16.mxu0 0
      %467 = vmatmul.mubr.bf16.gmra.mxu0 %v333
      %v468 = vpop.f32.mrf.mxu0
      %v469 = vadd.f32 %v264, %v468
      %v470 = vpop.f32.mrf.mxu0
      %v471 = vpop.f32.mrf.mxu0
      %v472 = vadd.f32 %v264, %v471
      %v473 = vpop.f32.mrf.mxu0
      %474 = vmatprep.mubr.bf16.mxu0 0
      %475 = vmatmul.mubr.bf16.gmra.mxu0 %v334
      %v476 = vpop.f32.mrf.mxu0
      %v477 = vadd.f32 %v264, %v476
      %v478 = vpop.f32.mrf.mxu0
      %v479 = vpop.f32.mrf.mxu0
      %v480 = vadd.f32 %v264, %v479
      %v481 = vpop.f32.mrf.mxu0
      %482 = vmatprep.mubr.bf16.mxu0 0
      %483 = vmatmul.mubr.bf16.gmra.mxu0 %v335
      %v484 = vpop.f32.mrf.mxu0
      %v485 = vadd.f32 %v264, %v484
      %v486 = vpop.f32.mrf.mxu0
      %v487 = vpop.f32.mrf.mxu0
      %v488 = vadd.f32 %v264, %v487
      %v489 = vpop.f32.mrf.mxu0
      %490 = vmatprep.mubr.bf16.mxu0 0
      %491 = vmatmul.mubr.bf16.gmra.mxu0 %v336
      %v492 = vpop.f32.mrf.mxu0
      %v493 = vadd.f32 %v264, %v492
      %v494 = vpop.f32.mrf.mxu0
      %v495 = vpop.f32.mrf.mxu0
      %v496 = vadd.f32 %v264, %v495
      %v497 = vpop.f32.mrf.mxu0
      %498 = vmatprep.mubr.bf16.mxu0 0
      %499 = vmatmul.mubr.bf16.gmra.mxu0 %v337
      %v500 = vpop.f32.mrf.mxu0
      %v501 = vadd.f32 %v264, %v500
      %v502 = vpop.f32.mrf.mxu0
      %v503 = vpop.f32.mrf.mxu0
      %v504 = vadd.f32 %v264, %v503
      %v505 = vpop.f32.mrf.mxu0
      %506 = vmatprep.mubr.bf16.mxu0 0
      %507 = vmatmul.mubr.bf16.gmra.mxu0 %v338
      %v508 = vpop.f32.mrf.mxu0
      %v509 = vadd.f32 %v264, %v508
      %v510 = vpop.f32.mrf.mxu0
      %v511 = vpop.f32.mrf.mxu0
      %v512 = vadd.f32 %v264, %v511
      %v513 = vpop.f32.mrf.mxu0
      %514 = vmatprep.mubr.bf16.mxu0 0
      %515 = vmatmul.mubr.bf16.gmra.mxu0 %v339
      %v516 = vpop.f32.mrf.mxu0
      %v517 = vadd.f32 %v264, %v516
      %v518 = vpop.f32.mrf.mxu0
      %v519 = vpop.f32.mrf.mxu0
      %v520 = vadd.f32 %v264, %v519
      %v521 = vpop.f32.mrf.mxu0
      %522 = vmatprep.mubr.bf16.mxu0 0
      %523 = vmatmul.mubr.bf16.gmra.mxu0 %v340
      %v524 = vpop.f32.mrf.mxu0
      %v525 = vadd.f32 %v264, %v524
      %v526 = vpop.f32.mrf.mxu0
      %v527 = vpop.f32.mrf.mxu0
      %v528 = vadd.f32 %v264, %v527
      %v529 = vpop.f32.mrf.mxu0
      %530 = vmatprep.mubr.bf16.mxu0 0
      %531 = vmatmul.mubr.bf16.gmra.mxu0 %v341
      %v532 = vpop.f32.mrf.mxu0
      %v533 = vadd.f32 %v264, %v532
      %v534 = vpop.f32.mrf.mxu0
      %v535 = vpop.f32.mrf.mxu0
      %v536 = vadd.f32 %v264, %v535
      %v537 = vpop.f32.mrf.mxu0
      %538 = vmatprep.mubr.bf16.mxu0 0
      %539 = vmatmul.mubr.bf16.gmra.mxu0 %v342
      %v540 = vpop.f32.mrf.mxu0
      %v541 = vadd.f32 %v264, %v540
      %v542 = vpop.f32.mrf.mxu0
      %v543 = vpop.f32.mrf.mxu0
      %v544 = vadd.f32 %v264, %v543
      %v545 = vpop.f32.mrf.mxu0
      %546 = vmatprep.mubr.bf16.mxu0 0
      %547 = vmatmul.mubr.bf16.gmra.mxu0 %v343
      %v548 = vpop.f32.mrf.mxu0
      %v549 = vadd.f32 %v264, %v548
      %v550 = vpop.f32.mrf.mxu0
      %v551 = vpop.f32.mrf.mxu0
      %v552 = vadd.f32 %v264, %v551
      %v553 = vpop.f32.mrf.mxu0
      %554 = vmatprep.mubr.bf16.mxu0 0
      %555 = vmatmul.mubr.bf16.gmra.mxu0 %v344
      %v556 = vpop.f32.mrf.mxu0
      %v557 = vadd.f32 %v264, %v556
      %v558 = vpop.f32.mrf.mxu0
      %v559 = vpop.f32.mrf.mxu0
      %v560 = vadd.f32 %v264, %v559
      %v561 = vpop.f32.mrf.mxu0
      %562 = vmatprep.mubr.bf16.mxu0 0
      %563 = vmatmul.mubr.bf16.gmra.mxu0 %v345
      %v564 = vpop.f32.mrf.mxu0
      %v565 = vadd.f32 %v264, %v564
      %v566 = vpop.f32.mrf.mxu0
      %v567 = vpop.f32.mrf.mxu0
      %v568 = vadd.f32 %v264, %v567
      %v569 = vpop.f32.mrf.mxu0
      %570 = vdwg.mxu0
      %v571 = vsub.f32 0.0, %v445
      %v572 = vsub.f32 0.0, %v448
      %v573 = vsub.f32 0.0, %v453
      %v574 = vsub.f32 0.0, %v456
      %v575 = vsub.f32 0.0, %v461
      %v576 = vsub.f32 0.0, %v464
      %v577 = vsub.f32 0.0, %v469
      %v578 = vsub.f32 0.0, %v472
      %v579 = vsub.f32 0.0, %v477
      %v580 = vsub.f32 0.0, %v480
      %v581 = vsub.f32 0.0, %v485
      %v582 = vsub.f32 0.0, %v488
      %v583 = vsub.f32 0.0, %v493
      %v584 = vsub.f32 0.0, %v496
      %v585 = vsub.f32 0.0, %v501
      %v586 = vsub.f32 0.0, %v504
      %v587 = vsub.f32 0.0, %v509
      %v588 = vsub.f32 0.0, %v512
      %v589 = vsub.f32 0.0, %v517
      %v590 = vsub.f32 0.0, %v520
      %v591 = vsub.f32 0.0, %v525
      %v592 = vsub.f32 0.0, %v528
      %v593 = vsub.f32 0.0, %v533
      %v594 = vsub.f32 0.0, %v536
      %v595 = vsub.f32 0.0, %v541
      %v596 = vsub.f32 0.0, %v544
      %v597 = vsub.f32 0.0, %v549
      %v598 = vsub.f32 0.0, %v552
      %v599 = vsub.f32 0.0, %v557
      %v600 = vsub.f32 0.0, %v560
      %v601 = vsub.f32 0.0, %v565
      %v602 = vsub.f32 0.0, %v568
      %v603 = vmul.f32 %v571, 1.442695
      %v604 = vpow.pop %v603
      %v605 = vmul.f32 %v572, 1.442695
      %v606 = vpow.pop %v605
      %v607 = vmul.f32 %v573, 1.442695
      %v608 = vpow.pop %v607
      %v609 = vmul.f32 %v574, 1.442695
      %v610 = vpow.pop %v609
      %v611 = vmul.f32 %v575, 1.442695
      %v612 = vpow.pop %v611
      %v613 = vmul.f32 %v576, 1.442695
      %v614 = vpow.pop %v613
      %v615 = vmul.f32 %v577, 1.442695
      %v616 = vpow.pop %v615
      %v617 = vmul.f32 %v578, 1.442695
      %v618 = vpow.pop %v617
      %v619 = vmul.f32 %v579, 1.442695
      %v620 = vpow.pop %v619
      %v621 = vmul.f32 %v580, 1.442695
      %v622 = vpow.pop %v621
      %v623 = vmul.f32 %v581, 1.442695
      %v624 = vpow.pop %v623
      %v625 = vmul.f32 %v582, 1.442695
      %v626 = vpow.pop %v625
      %v627 = vmul.f32 %v583, 1.442695
      %v628 = vpow.pop %v627
      %v629 = vmul.f32 %v584, 1.442695
      %v630 = vpow.pop %v629
      %v631 = vmul.f32 %v585, 1.442695
      %v632 = vpow.pop %v631
      %v633 = vmul.f32 %v586, 1.442695
      %v634 = vpow.pop %v633
      %v635 = vmul.f32 %v587, 1.442695
      %v636 = vpow.pop %v635
      %v637 = vmul.f32 %v588, 1.442695
      %v638 = vpow.pop %v637
      %v639 = vmul.f32 %v589, 1.442695
      %v640 = vpow.pop %v639
      %v641 = vmul.f32 %v590, 1.442695
      %v642 = vpow.pop %v641
      %v643 = vmul.f32 %v591, 1.442695
      %v644 = vpow.pop %v643
      %v645 = vmul.f32 %v592, 1.442695
      %v646 = vpow.pop %v645
      %v647 = vmul.f32 %v593, 1.442695
      %v648 = vpow.pop %v647
      %v649 = vmul.f32 %v594, 1.442695
      %v650 = vpow.pop %v649
      %v651 = vmul.f32 %v595, 1.442695
      %v652 = vpow.pop %v651
      %v653 = vmul.f32 %v596, 1.442695
      %v654 = vpow.pop %v653
      %v655 = vmul.f32 %v597, 1.442695
      %v656 = vpow.pop %v655
      %v657 = vmul.f32 %v598, 1.442695
      %v658 = vpow.pop %v657
      %v659 = vmul.f32 %v599, 1.442695
      %v660 = vpow.pop %v659
      %v661 = vmul.f32 %v600, 1.442695
      %v662 = vpow.pop %v661
      %v663 = vmul.f32 %v601, 1.442695
      %v664 = vpow.pop %v663
      %v665 = vmul.f32 %v602, 1.442695
      %v666 = vpow.pop %v665
      %v667 = vadd.f32 %v604, 1.0
      %v668 = vadd.f32 %v606, 1.0
      %v669 = vadd.f32 %v608, 1.0
      %v670 = vadd.f32 %v610, 1.0
      %v671 = vadd.f32 %v612, 1.0
      %v672 = vadd.f32 %v614, 1.0
      %v673 = vadd.f32 %v616, 1.0
      %v674 = vadd.f32 %v618, 1.0
      %v675 = vadd.f32 %v620, 1.0
      %v676 = vadd.f32 %v622, 1.0
      %v677 = vadd.f32 %v624, 1.0
      %v678 = vadd.f32 %v626, 1.0
      %v679 = vadd.f32 %v628, 1.0
      %v680 = vadd.f32 %v630, 1.0
      %v681 = vadd.f32 %v632, 1.0
      %v682 = vadd.f32 %v634, 1.0
      %v683 = vadd.f32 %v636, 1.0
      %v684 = vadd.f32 %v638, 1.0
      %v685 = vadd.f32 %v640, 1.0
      %v686 = vadd.f32 %v642, 1.0
      %v687 = vadd.f32 %v644, 1.0
      %v688 = vadd.f32 %v646, 1.0
      %v689 = vadd.f32 %v648, 1.0
      %v690 = vadd.f32 %v650, 1.0
      %v691 = vadd.f32 %v652, 1.0
      %v692 = vadd.f32 %v654, 1.0
      %v693 = vadd.f32 %v656, 1.0
      %v694 = vadd.f32 %v658, 1.0
      %v695 = vadd.f32 %v660, 1.0
      %v696 = vadd.f32 %v662, 1.0
      %v697 = vadd.f32 %v664, 1.0
      %v698 = vadd.f32 %v666, 1.0
      %v699 = vrcp.pop %v667
      %v700 = vrcp.pop %v668
      %v701 = vrcp.pop %v669
      %v702 = vrcp.pop %v670
      %v703 = vrcp.pop %v671
      %v704 = vrcp.pop %v672
      %v705 = vrcp.pop %v673
      %v706 = vrcp.pop %v674
      %v707 = vrcp.pop %v675
      %v708 = vrcp.pop %v676
      %v709 = vrcp.pop %v677
      %v710 = vrcp.pop %v678
      %v711 = vrcp.pop %v679
      %v712 = vrcp.pop %v680
      %v713 = vrcp.pop %v681
      %v714 = vrcp.pop %v682
      %v715 = vrcp.pop %v683
      %v716 = vrcp.pop %v684
      %v717 = vrcp.pop %v685
      %v718 = vrcp.pop %v686
      %v719 = vrcp.pop %v687
      %v720 = vrcp.pop %v688
      %v721 = vrcp.pop %v689
      %v722 = vrcp.pop %v690
      %v723 = vrcp.pop %v691
      %v724 = vrcp.pop %v692
      %v725 = vrcp.pop %v693
      %v726 = vrcp.pop %v694
      %v727 = vrcp.pop %v695
      %v728 = vrcp.pop %v696
      %v729 = vrcp.pop %v697
      %v730 = vrcp.pop %v698
      %v731 = vmul.f32 %v445, %v699
      %v732 = vmul.f32 %v448, %v700
      %v733 = vmul.f32 %v453, %v701
      %v734 = vmul.f32 %v456, %v702
      %v735 = vmul.f32 %v461, %v703
      %v736 = vmul.f32 %v464, %v704
      %v737 = vmul.f32 %v469, %v705
      %v738 = vmul.f32 %v472, %v706
      %v739 = vmul.f32 %v477, %v707
      %v740 = vmul.f32 %v480, %v708
      %v741 = vmul.f32 %v485, %v709
      %v742 = vmul.f32 %v488, %v710
      %v743 = vmul.f32 %v493, %v711
      %v744 = vmul.f32 %v496, %v712
      %v745 = vmul.f32 %v501, %v713
      %v746 = vmul.f32 %v504, %v714
      %v747 = vmul.f32 %v509, %v715
      %v748 = vmul.f32 %v512, %v716
      %v749 = vmul.f32 %v517, %v717
      %v750 = vmul.f32 %v520, %v718
      %v751 = vmul.f32 %v525, %v719
      %v752 = vmul.f32 %v528, %v720
      %v753 = vmul.f32 %v533, %v721
      %v754 = vmul.f32 %v536, %v722
      %v755 = vmul.f32 %v541, %v723
      %v756 = vmul.f32 %v544, %v724
      %v757 = vmul.f32 %v549, %v725
      %v758 = vmul.f32 %v552, %v726
      %v759 = vmul.f32 %v557, %v727
      %v760 = vmul.f32 %v560, %v728
      %v761 = vmul.f32 %v565, %v729
      %v762 = vmul.f32 %v568, %v730
      %763 = vst [vmem:[%s208] sm:$0xff] %v731
      %764 = vst [vmem:[%s208 + $0x8] sm:$0xff] %v732
      %765 = vst [vmem:[%s208 + $0x10] sm:$0xff] %v733
      %766 = vst [vmem:[%s208 + $0x18] sm:$0xff] %v734
      %767 = vst [vmem:[%s208 + $0x20] sm:$0xff] %v735
      %768 = vst [vmem:[%s208 + $0x28] sm:$0xff] %v736
      %769 = vst [vmem:[%s208 + $0x30] sm:$0xff] %v737
      %770 = vst [vmem:[%s208 + $0x38] sm:$0xff] %v738
      %771 = vst [vmem:[%s208 + $0x40] sm:$0xff] %v739
      %772 = vst [vmem:[%s208 + $0x48] sm:$0xff] %v740
      %773 = vst [vmem:[%s208 + $0x50] sm:$0xff] %v741
      %774 = vst [vmem:[%s208 + $0x58] sm:$0xff] %v742
      %775 = vst [vmem:[%s208 + $0x60] sm:$0xff] %v743
      %776 = vst [vmem:[%s208 + $0x68] sm:$0xff] %v744
      %777 = vst [vmem:[%s208 + $0x70] sm:$0xff] %v745
      %778 = vst [vmem:[%s208 + $0x78] sm:$0xff] %v746
      %779 = vst [vmem:[%s208 + $0x80] sm:$0xff] %v747
      %780 = vst [vmem:[%s208 + $0x88] sm:$0xff] %v748
      %781 = vst [vmem:[%s208 + $0x90] sm:$0xff] %v749
      %782 = vst [vmem:[%s208 + $0x98] sm:$0xff] %v750
      %783 = vst [vmem:[%s208 + $0xa0] sm:$0xff] %v751
      %784 = vst [vmem:[%s208 + $0xa8] sm:$0xff] %v752
      %785 = vst [vmem:[%s208 + $0xb0] sm:$0xff] %v753
      %786 = vst [vmem:[%s208 + $0xb8] sm:$0xff] %v754
      %787 = vst [vmem:[%s208 + $0xc0] sm:$0xff] %v755
      %788 = vst [vmem:[%s208 + $0xc8] sm:$0xff] %v756
      %789 = vst [vmem:[%s208 + $0xd0] sm:$0xff] %v757
      %790 = vst [vmem:[%s208 + $0xd8] sm:$0xff] %v758
      %791 = vst [vmem:[%s208 + $0xe0] sm:$0xff] %v759
      %792 = vst [vmem:[%s208 + $0xe8] sm:$0xff] %v760
      %793 = vst [vmem:[%s208 + $0xf0] sm:$0xff] %v761
      %794 = vst [vmem:[%s208 + $0xf8] sm:$0xff] %v762
      %s795 = smul.u32 32, %s19
      %p796 = scmp.lt.s32.totalorder %s18, 1
      %s797 = scalar_select %p796, %s18, 1
      %p798 = scmp.lt.s32.totalorder %s795, 31
      %s799 = scalar_select %p798, %s795, 31
      %s800 = smul.addr %s797, 32
      %s801 = sadd.s32 %s799, %s800
      %s802 = smul.addr %s801, 8
      %s803 = scalar_lea.vmem %s3, %s802
      // Predicated region
      $region33: #{conv_bn_silu_forward.1} parent=31 // pred_check
        %p804 = pneg %p116
      $region34: #{conv_bn_silu_forward.1} parent=31 // pred_check_branch
        %806 = sbr.rel (%p804) target = $region36
      $region35: #{conv_bn_silu_forward.1} parent=31 // pred_region
        %s807 = smul.u32 32, %s19
      $region36: #{conv_bn_silu_forward.1} parent=31 // pred_fallthru
        _
    $region32: #{conv_bn_silu_forward.1} parent=5 // pred_fallthru
      _
    %p808 = scmp.le.s32.totalorder 2, %s9
    // Predicated region
    $region37: #{conv_bn_silu_forward.1} parent=5 // pred_check
      %p809 = pneg %p808
    $region38: #{conv_bn_silu_forward.1} parent=5 // pred_check_branch
      %811 = sbr.rel (%p809) target = $region40
    $region39: #{conv_bn_silu_forward.1} parent=5 // pred_region
      %s812 = ssub.s32 %s9, 2
      // Predicated region
      $region41: #{conv_bn_silu_forward.1} parent=39 // pred_check
        %p813 = pneg %p122
      $region42: #{conv_bn_silu_forward.1} parent=39 // pred_check_branch
        %815 = sbr.rel (%p813) target = $region44
      $region43: #{conv_bn_silu_forward.1} parent=39 // pred_region
        %s816 = smul.u32 32, %s21
        %p817 = scmp.lt.s32.totalorder %s20, 1
        %s818 = scalar_select %p817, %s20, 1
        %p819 = scmp.lt.s32.totalorder %s816, 31
        %s820 = scalar_select %p819, %s816, 31
        %s821 = smul.addr %s818, 32
        %s822 = sadd.s32 %s820, %s821
        %s823 = smul.addr %s822, 8
        %s824 = scalar_lea.vmem %s3, %s823
      $region44: #{conv_bn_silu_forward.1} parent=39 // pred_fallthru
        _
    $region40: #{conv_bn_silu_forward.1} parent=5 // pred_fallthru
      _
  $region6: #{conv_bn_silu_forward.1} parent=0 // loop_footer
    %s13 = sadd.s32 1, %s9
  $region7: #{conv_bn_silu_forward.1} parent=0 // loop_footer_branch
    %8 = sbr.rel target = $region3
  $region8: #{conv_bn_silu_forward.1} parent=0 // loop_exit
    _

</llo_original>
